<compile_context>
chip_gen: v6e
topology: v6e:2x2x1
jax: 0.10.0
libtpu: 0.0.40
codegen_flags: <defaults>
</compile_context>

<pallas_src>
import functools

import jax
import jax.numpy as jnp
from jax.experimental import pallas as pl
from jax.experimental.pallas import tpu as pltpu


def _round_up(x: int, m: int) -> int:
    return ((x + m - 1) // m) * m


def _context_kernel(enc_ref, w_ref, dec_ref, out_ref,
                    dproj_ref, acc_ref, m_ref, l_ref,
                    *, seq_len, seq_tile, needs_mask, compute_dtype):
    s = pl.program_id(0)

    @pl.when(s == 0)
    def _init():
        # Fold W into the decoder query once per call:
        #   dproj[b, e] = sum_d dec[b, d] * W[e, d]
        # After this, each streamed enc tile only needs O(B*E) MXU work.
        dproj = jax.lax.dot_general(
            dec_ref[...], w_ref[...], (((1,), (1,)), ((), ())),
            preferred_element_type=jnp.float32)                  # (B_pad, E_pad)
        dproj_ref[...] = dproj.astype(dproj_ref.dtype)
        m_ref[...] = jnp.full_like(m_ref, -jnp.inf)
        l_ref[...] = jnp.zeros_like(l_ref)
        acc_ref[...] = jnp.zeros_like(acc_ref)

    enc = enc_ref[...]                                           # (tS, E_pad)

    # scores[b, s] = sum_e dproj[b, e] * enc[s, e]  -- Q@K^T attention form.
    scores = jax.lax.dot_general(
        dproj_ref[...], enc, (((1,), (1,)), ((), ())),
        preferred_element_type=jnp.float32)                      # (B_pad, tS)

    if needs_mask:
        # Mask the zero-padded sequence positions of the last tile.
        pos = s * seq_tile + jax.lax.broadcasted_iota(jnp.int32, scores.shape, 1)
        scores = jnp.where(pos < seq_len, scores, -jnp.inf)

    # ---- online softmax over the sequence axis (lanes), all f32 ----
    m_prev = m_ref[...]                                          # (B_pad, 1)
    m_new = jnp.maximum(m_prev, jnp.max(scores, axis=1, keepdims=True))
    alpha = jnp.exp(m_prev - m_new)                              # (B_pad, 1)
    p = jnp.exp(scores - m_new)                                  # (B_pad, tS)
    l_ref[...] = alpha * l_ref[...] + jnp.sum(p, axis=1, keepdims=True)
    m_ref[...] = m_new

    # context partial: sum_s p[b, s] * enc[s, e]  -- contract S, MXU NN form.
    ctx = jax.lax.dot_general(
        p.astype(compute_dtype), enc, (((1,), (0,)), ((), ())),
        preferred_element_type=jnp.float32)                      # (B_pad, E_pad)
    acc_ref[...] = alpha * acc_ref[...] + ctx

    @pl.when(s == pl.num_programs(0) - 1)
    def _finalize():
        # 1/denominator folded into the epilogue, on (B,1); EUP vrcp.
        inv_l = pl.reciprocal(l_ref[...], approx=True)
        out_ref[...] = (acc_ref[...] * inv_l).astype(out_ref.dtype)


def context_inner_prod(encoder_hiddens, W, decoder_hidden, *,
                       compute_dtype=None, seq_tile=None):
    """Pallas implementation of ContextInnerProd.forward.

    encoder_hiddens: (seq_len, enc_hidden)
    W:               (enc_hidden, dec_hidden)
    decoder_hidden:  (batch, dec_hidden)   -- batching decode steps (batch>1)
                                              improves MXU utilization.
    returns          (batch, enc_hidden) float32 context.
    """
    seq_len, enc_h = encoder_hiddens.shape
    batch, dec_h = decoder_hidden.shape
    assert W.shape == (enc_h, dec_h)

    if compute_dtype is None:
        compute_dtype = encoder_hiddens.dtype
    compute_dtype = jnp.dtype(compute_dtype)
    itemsize = compute_dtype.itemsize

    # Pad to hardware-friendly shapes: lane-dense (multiple of 128) contraction
    # and output dims, sublane-aligned (multiple of 8) batch.  Zero padding is
    # exact for the matmuls; padded batch rows / enc columns are sliced away.
    e_pad = _round_up(enc_h, 128)
    d_pad = _round_up(dec_h, 128)
    b_pad = _round_up(batch, 8)

    # Sequence tile: multiple of 8, sized so the double-buffered enc stream
    # plus the resident W / dec / dproj / accumulator stays inside the scoped
    # VMEM default on every generation (v5e 16 MiB is the tightest default).
    if seq_tile is None:
        resident = (2 * e_pad * d_pad * itemsize              # W (double-buffered)
                    + 2 * b_pad * d_pad * itemsize            # dec
                    + b_pad * e_pad * (4 + 4 + itemsize))     # out + acc + dproj
        budget = max(1 << 20, (14 << 20) - resident)          # enc-stream budget
        t = budget // (2 * e_pad * itemsize)
        t = max(8, (t // 8) * 8)
        seq_tile = int(min(t, 4096, _round_up(seq_len, 8)))
    tS = int(seq_tile)
    assert tS % 8 == 0
    grid_s = -(-seq_len // tS)
    s_pad = grid_s * tS

    enc_p = jnp.pad(encoder_hiddens.astype(compute_dtype),
                    ((0, s_pad - seq_len), (0, e_pad - enc_h)))
    w_p = jnp.pad(W.astype(compute_dtype),
                  ((0, e_pad - enc_h), (0, d_pad - dec_h)))
    dec_p = jnp.pad(decoder_hidden.astype(compute_dtype),
                    ((0, b_pad - batch), (0, d_pad - dec_h)))

    kernel = functools.partial(
        _context_kernel,
        seq_len=seq_len, seq_tile=tS,
        needs_mask=(s_pad != seq_len), compute_dtype=compute_dtype)

    flops = (2 * b_pad * e_pad * d_pad        # one-time fold dec @ W^T
             + 4 * s_pad * b_pad * e_pad)     # scores + context per element
    transcendentals = s_pad * b_pad + 2 * grid_s * b_pad
    bytes_accessed = ((enc_p.size + w_p.size + dec_p.size) * itemsize
                      + b_pad * e_pad * 4)
    cost = pl.CostEstimate(flops=int(flops),
                           transcendentals=int(transcendentals),
                           bytes_accessed=int(bytes_accessed))

    out_padded = pl.pallas_call(
        kernel,
        out_shape=jax.ShapeDtypeStruct((b_pad, e_pad), jnp.float32),
        grid_spec=pltpu.PrefetchScalarGridSpec(
            num_scalar_prefetch=0,
            grid=(grid_s,),
            in_specs=[
                pl.BlockSpec((tS, e_pad), lambda i: (i, 0)),      # enc: streamed
                pl.BlockSpec((e_pad, d_pad), lambda i: (0, 0)),   # W:   resident
                pl.BlockSpec((b_pad, d_pad), lambda i: (0, 0)),   # dec: resident
            ],
            out_specs=pl.BlockSpec((b_pad, e_pad), lambda i: (0, 0)),
            scratch_shapes=[
                pltpu.VMEM((b_pad, e_pad), compute_dtype),  # folded decoder query
                pltpu.VMEM((b_pad, e_pad), jnp.float32),    # context accumulator
                pltpu.VMEM((b_pad, 1), jnp.float32),        # running max
                pltpu.VMEM((b_pad, 1), jnp.float32),        # running sum
            ],
        ),
        compiler_params=pltpu.CompilerParams(
            dimension_semantics=("arbitrary",)),  # sequence axis is a reduction
        cost_estimate=cost,
    )(enc_p, w_p, dec_p)

    return out_padded[:batch, :enc_h]


def _reference(encoder_hiddens, W, decoder_hidden):
    scores = (encoder_hiddens @ W) @ decoder_hidden.T
    weights = jax.nn.softmax(scores, axis=0)
    return weights.T @ encoder_hiddens


if __name__ == "__main__":
    # Small shapes consistent with the module's forward.
    seq_len, enc_hidden, dec_hidden, batch = 8, 32, 32, 1

    key = jax.random.PRNGKey(0)
    k_w, k_enc, k_dec = jax.random.split(key, 3)
    W = jax.random.normal(k_w, (enc_hidden, dec_hidden), jnp.float32) * 0.01
    enc = jax.random.normal(k_enc, (seq_len, enc_hidden), jnp.float32)
    dec = jax.random.normal(k_dec, (batch, dec_hidden), jnp.float32)

    ref = _reference(enc, W, dec)

    # f32 compute path.
    out_f32 = jax.block_until_ready(context_inner_prod(enc, W, dec))
    assert out_f32.shape == (batch, enc_hidden)
    assert out_f32.dtype == jnp.float32
    assert jnp.allclose(out_f32, ref, atol=5e-3, rtol=5e-3), "f32 mismatch vs reference"

    # bf16-operand / f32-accumulate MXU path (compute_dtype knob).
    out_bf16 = jax.block_until_ready(
        context_inner_prod(enc, W, dec, compute_dtype=jnp.bfloat16))
    assert jnp.allclose(out_bf16, ref, atol=3e-2, rtol=3e-2), "bf16 mismatch vs reference"

    # Multi-tile online-softmax path (seq_len not a multiple of the tile -> masking).
    seq2 = 300
    enc2 = jax.random.normal(jax.random.PRNGKey(1), (seq2, enc_hidden), jnp.float32)
    out2 = jax.block_until_ready(context_inner_prod(enc2, W, dec, seq_tile=128))
    ref2 = _reference(enc2, W, dec)
    assert jnp.allclose(out2, ref2, atol=5e-3, rtol=5e-3), "tiled mismatch vs reference"

    print("KERNEL_OK")
</pallas_src>

<mosaic_0001>
module attributes {stable_mosaic.version = 11 : i64} {
  func.func @_context_kernel(%arg0: i32, %arg1: memref<8x128xf32, #tpu.memory_space<vmem>>, %arg2: memref<128x128xf32, #tpu.memory_space<vmem>>, %arg3: memref<8x128xf32, #tpu.memory_space<vmem>>, %arg4: memref<8x128xf32, #tpu.memory_space<vmem>>, %arg5: memref<8x128xf32, #tpu.memory_space<vmem>>, %arg6: memref<8x128xf32, #tpu.memory_space<vmem>>, %arg7: memref<8x1xf32, #tpu.memory_space<vmem>>, %arg8: memref<8x1xf32, #tpu.memory_space<vmem>>) attributes {dimension_semantics = [#tpu.dimension_semantics<arbitrary>], iteration_bounds = array<i64: 1>, scalar_prefetch = 0 : i64, scratch_operands = 4 : i64, tpu.core_type = #tpu.core_type<tc>, window_params = [{transform_indices = @transform_0, window_bounds = array<i64: 8, 128>}, {pipeline_mode = #tpu.pipeline_mode<synchronous>, transform_indices = @transform_1, window_bounds = array<i64: 128, 128>}, {pipeline_mode = #tpu.pipeline_mode<synchronous>, transform_indices = @transform_2, window_bounds = array<i64: 8, 128>}, {pipeline_mode = #tpu.pipeline_mode<synchronous>, transform_indices = @transform_3, window_bounds = array<i64: 8, 128>}]} {
    %c0_i32 = arith.constant 0 : i32
    %0 = arith.cmpi eq, %arg0, %c0_i32 : i32
    %1 = arith.extui %0 : i1 to i32
    %c0_i32_0 = arith.constant 0 : i32
    %2 = arith.cmpi ne, %1, %c0_i32_0 : i32
    scf.if %2 {
      %c0_21 = arith.constant 0 : index
      %c0_22 = arith.constant 0 : index
      %31 = vector.load %arg3[%c0_21, %c0_22] : memref<8x128xf32, #tpu.memory_space<vmem>>, vector<8x128xf32>
      %c0_23 = arith.constant 0 : index
      %c0_24 = arith.constant 0 : index
      %32 = vector.load %arg2[%c0_23, %c0_24] : memref<128x128xf32, #tpu.memory_space<vmem>>, vector<128x128xf32>
      %cst_25 = arith.constant dense<0.000000e+00> : vector<8x128xf32>
      %33 = tpu.matmul %31, %32, %cst_25 {dimension_numbers = #tpu.dot_dimension_numbers<[1], [1], [0], [0], [0, 0, 1, 0], [], []>} : vector<8x128xf32>, vector<128x128xf32>, vector<8x128xf32> -> vector<8x128xf32>
      %c0_26 = arith.constant 0 : index
      %c0_27 = arith.constant 0 : index
      %34 = vector.load %arg5[%c0_26, %c0_27] : memref<8x128xf32, #tpu.memory_space<vmem>>, vector<8x128xf32>
      tpu.vector_store %arg5[%c0_26, %c0_27], %33 {strides = array<i32>} : memref<8x128xf32, #tpu.memory_space<vmem>>, vector<8x128xf32>,
      %cst_28 = arith.constant 0xFF800000 : f32
      %35 = vector.broadcast %cst_28 : f32 to vector<8x1xf32>
      %c0_29 = arith.constant 0 : index
      %c0_30 = arith.constant 0 : index
      %36 = vector.load %arg7[%c0_29, %c0_30] : memref<8x1xf32, #tpu.memory_space<vmem>>, vector<8x1xf32>
      tpu.vector_store %arg7[%c0_29, %c0_30], %35 {strides = array<i32>} : memref<8x1xf32, #tpu.memory_space<vmem>>, vector<8x1xf32>,
      %cst_31 = arith.constant 0.000000e+00 : f32
      %37 = vector.broadcast %cst_31 : f32 to vector<8x1xf32>
      %c0_32 = arith.constant 0 : index
      %c0_33 = arith.constant 0 : index
      %38 = vector.load %arg8[%c0_32, %c0_33] : memref<8x1xf32, #tpu.memory_space<vmem>>, vector<8x1xf32>
      tpu.vector_store %arg8[%c0_32, %c0_33], %37 {strides = array<i32>} : memref<8x1xf32, #tpu.memory_space<vmem>>, vector<8x1xf32>,
      %cst_34 = arith.constant 0.000000e+00 : f32
      %39 = vector.broadcast %cst_34 : f32 to vector<8x128xf32>
      %c0_35 = arith.constant 0 : index
      %c0_36 = arith.constant 0 : index
      %40 = vector.load %arg6[%c0_35, %c0_36] : memref<8x128xf32, #tpu.memory_space<vmem>>, vector<8x128xf32>
      tpu.vector_store %arg6[%c0_35, %c0_36], %39 {strides = array<i32>} : memref<8x128xf32, #tpu.memory_space<vmem>>, vector<8x128xf32>,
    } else {
    }
    %c0 = arith.constant 0 : index
    %c0_1 = arith.constant 0 : index
    %3 = vector.load %arg1[%c0, %c0_1] : memref<8x128xf32, #tpu.memory_space<vmem>>, vector<8x128xf32>
    %c0_2 = arith.constant 0 : index
    %c0_3 = arith.constant 0 : index
    %4 = vector.load %arg5[%c0_2, %c0_3] : memref<8x128xf32, #tpu.memory_space<vmem>>, vector<8x128xf32>
    %cst = arith.constant dense<0.000000e+00> : vector<8x8xf32>
    %5 = tpu.matmul %4, %3, %cst {dimension_numbers = #tpu.dot_dimension_numbers<[1], [1], [0], [0], [0, 0, 1, 0], [], []>} : vector<8x128xf32>, vector<8x128xf32>, vector<8x8xf32> -> vector<8x8xf32>
    %c0_4 = arith.constant 0 : index
    %c0_5 = arith.constant 0 : index
    %6 = vector.load %arg7[%c0_4, %c0_5] : memref<8x1xf32, #tpu.memory_space<vmem>>, vector<8x1xf32>
    %cst_6 = arith.constant dense<0xFF800000> : vector<8xf32>
    %7 = vector.multi_reduction <maximumf>, %5, %cst_6 [1] : vector<8x8xf32> to vector<8xf32>
    %8 = vector.shape_cast %7 : vector<8xf32> to vector<8x1xf32>
    %9 = arith.maximumf %6, %8 : vector<8x1xf32>
    %10 = arith.subf %6, %9 : vector<8x1xf32>
    %11 = math.exp %10 : vector<8x1xf32>
    %12 = vector.broadcast %9 : vector<8x1xf32> to vector<8x8xf32>
    %13 = arith.subf %5, %12 : vector<8x8xf32>
    %14 = math.exp %13 : vector<8x8xf32>
    %c0_7 = arith.constant 0 : index
    %c0_8 = arith.constant 0 : index
    %15 = vector.load %arg8[%c0_7, %c0_8] : memref<8x1xf32, #tpu.memory_space<vmem>>, vector<8x1xf32>
    %16 = arith.mulf %11, %15 : vector<8x1xf32>
    %cst_9 = arith.constant dense<0.000000e+00> : vector<8xf32>
    %17 = vector.multi_reduction <add>, %14, %cst_9 [1] : vector<8x8xf32> to vector<8xf32>
    %18 = vector.shape_cast %17 : vector<8xf32> to vector<8x1xf32>
    %19 = arith.addf %16, %18 : vector<8x1xf32>
    %c0_10 = arith.constant 0 : index
    %c0_11 = arith.constant 0 : index
    %20 = vector.load %arg8[%c0_10, %c0_11] : memref<8x1xf32, #tpu.memory_space<vmem>>, vector<8x1xf32>
    tpu.vector_store %arg8[%c0_10, %c0_11], %19 {strides = array<i32>} : memref<8x1xf32, #tpu.memory_space<vmem>>, vector<8x1xf32>,
    %c0_12 = arith.constant 0 : index
    %c0_13 = arith.constant 0 : index
    %21 = vector.load %arg7[%c0_12, %c0_13] : memref<8x1xf32, #tpu.memory_space<vmem>>, vector<8x1xf32>
    tpu.vector_store %arg7[%c0_12, %c0_13], %9 {strides = array<i32>} : memref<8x1xf32, #tpu.memory_space<vmem>>, vector<8x1xf32>,
    %cst_14 = arith.constant dense<0.000000e+00> : vector<8x128xf32>
    %22 = tpu.matmul %14, %3, %cst_14 {dimension_numbers = #tpu.dot_dimension_numbers<[1], [0], [0], [1], [0, 0, 1, 1], [], []>} : vector<8x8xf32>, vector<8x128xf32>, vector<8x128xf32> -> vector<8x128xf32>
    %c0_15 = arith.constant 0 : index
    %c0_16 = arith.constant 0 : index
    %23 = vector.load %arg6[%c0_15, %c0_16] : memref<8x128xf32, #tpu.memory_space<vmem>>, vector<8x128xf32>
    %24 = vector.broadcast %11 : vector<8x1xf32> to vector<8x128xf32>
    %25 = arith.mulf %24, %23 : vector<8x128xf32>
    %26 = arith.addf %25, %22 : vector<8x128xf32>
    %c0_17 = arith.constant 0 : index
    %c0_18 = arith.constant 0 : index
    %27 = vector.load %arg6[%c0_17, %c0_18] : memref<8x128xf32, #tpu.memory_space<vmem>>, vector<8x128xf32>
    tpu.vector_store %arg6[%c0_17, %c0_18], %26 {strides = array<i32>} : memref<8x128xf32, #tpu.memory_space<vmem>>, vector<8x128xf32>,
    %c0_i32_19 = arith.constant 0 : i32
    %28 = arith.cmpi eq, %arg0, %c0_i32_19 : i32
    %29 = arith.extui %28 : i1 to i32
    %c0_i32_20 = arith.constant 0 : i32
    %30 = arith.cmpi ne, %29, %c0_i32_20 : i32
    scf.if %30 {
      %c0_21 = arith.constant 0 : index
      %c0_22 = arith.constant 0 : index
      %31 = vector.load %arg8[%c0_21, %c0_22] : memref<8x1xf32, #tpu.memory_space<vmem>>, vector<8x1xf32>
      %32 = tpu.reciprocal %31 {approx = true} : vector<8x1xf32> -> vector<8x1xf32>
      %c0_23 = arith.constant 0 : index
      %c0_24 = arith.constant 0 : index
      %33 = vector.load %arg6[%c0_23, %c0_24] : memref<8x128xf32, #tpu.memory_space<vmem>>, vector<8x128xf32>
      %34 = vector.broadcast %32 : vector<8x1xf32> to vector<8x128xf32>
      %35 = arith.mulf %33, %34 : vector<8x128xf32>
      %c0_25 = arith.constant 0 : index
      %c0_26 = arith.constant 0 : index
      %36 = vector.load %arg4[%c0_25, %c0_26] : memref<8x128xf32, #tpu.memory_space<vmem>>, vector<8x128xf32>
      tpu.vector_store %arg4[%c0_25, %c0_26], %35 {strides = array<i32>} : memref<8x128xf32, #tpu.memory_space<vmem>>, vector<8x128xf32>,
    } else {
    }
    return
  }
  func.func @transform_0(%arg0: i32) -> (i32, i32) {
    %c0_i32 = arith.constant 0 : i32
    %c0_i32_0 = arith.constant 0 : i32
    return %arg0, %c0_i32 : i32, i32
  }
  func.func @transform_1(%arg0: i32) -> (i32, i32) {
    %c0_i32 = arith.constant 0 : i32
    %c0_i32_0 = arith.constant 0 : i32
    %c0_i32_1 = arith.constant 0 : i32
    return %c0_i32, %c0_i32_0 : i32, i32
  }
  func.func @transform_2(%arg0: i32) -> (i32, i32) {
    %c0_i32 = arith.constant 0 : i32
    %c0_i32_0 = arith.constant 0 : i32
    %c0_i32_1 = arith.constant 0 : i32
    return %c0_i32, %c0_i32_0 : i32, i32
  }
  func.func @transform_3(%arg0: i32) -> (i32, i32) {
    %c0_i32 = arith.constant 0 : i32
    %c0_i32_0 = arith.constant 0 : i32
    %c0_i32_1 = arith.constant 0 : i32
    return %c0_i32, %c0_i32_0 : i32, i32
  }
}

</mosaic_0001>

<llo_original>
// kernel: tpu_custom_call.1
$region0: #{tpu_custom_call.1}
  #allocation0 [shape = 'u32[]', space=smem, size = 0x4, offset = 0x4, fixed_abs, tag = 'smem constant byte address 0x4 - core index']
  #allocation1 [shape = 'u32[144,128]{1,0:T(1,128)}', space=vmem, size = 0x12000, scoped, tag = 'internal scratch']
  #allocation2 [shape = 'f32[8,128]{1,0:T(8,128)}', space=vmem, size = 0x1000, scoped, tag = 'scratch operand']
  #allocation3 [shape = 'f32[8,128]{1,0:T(8,128)}', space=vmem, size = 0x1000, scoped, tag = 'scratch operand']
  #allocation4 [shape = 'f32[8,1]{1,0:T(8,128)}', space=vmem, size = 0x1000, scoped, tag = 'scratch operand']
  #allocation5 [shape = 'f32[8,1]{1,0:T(8,128)}', space=vmem, size = 0x1000, scoped, tag = 'scratch operand']
  %s0 = inlined_call_operand.hbm [shape: f32[8,128], index: 0, kind: input, shape index: {}]
  %s1 = inlined_call_operand.hbm [shape: f32[128,128], index: 1, kind: input, shape index: {}]
  %s2 = inlined_call_operand.hbm [shape: f32[8,128], index: 2, kind: input, shape index: {}]
  %s3 = inlined_call_operand.hbm [shape: f32[8,128], index: 3, kind: output, shape index: {}]
  %s4 = sld [smem:[#allocation0]]
  $region42: #{tpu_custom_call.1} parent=0
    _
  %s6 = ssub.s32 1, %s4
  %s7 = scalar_select 0, %s6, %s4
  $region1: #{tpu_custom_call.1} parent=0
    #allocation6 [shape = 'u8[4096]{0}', space=vmem, size = 0x1000, scoped, tag = 'input window, operand 0, single buffered']
    #allocation7 [shape = 's32[1]{0}', space=sflag, size = 0x4, scoped, tag = 'scoped memory for tpu_custom_call.1']
    #allocation8 [shape = 's32[1]{0}', space=sflag, size = 0x4, scoped, tag = 'scoped memory for tpu_custom_call.1']
    #allocation9 [shape = 'u8[65536]{0}', space=vmem, size = 0x10000, scoped, tag = 'input window, operand 1, single buffered']
    #allocation10 [shape = 's32[1]{0}', space=sflag, size = 0x4, scoped, tag = 'scoped memory for tpu_custom_call.1']
    #allocation11 [shape = 'u8[4096]{0}', space=vmem, size = 0x1000, scoped, tag = 'input window, operand 2, single buffered']
    #allocation12 [shape = 'u8[4096]{0}', space=vmem, size = 0x1000, scoped, tag = 'output window, operand 0, single buffered']
    %8 = vsyncpa [#allocation7], 0
    %9 = vsyncpa [#allocation10], 0
    %10 = vsyncpa [#allocation8], 0
    // Predicated region
    $region2: #{tpu_custom_call.1} parent=1 // pred_check
      _
    $region3: #{tpu_custom_call.1} parent=1 // pred_check_branch
      %12 = sbr.rel (0) target = $region5
    $region4: #{tpu_custom_call.1} parent=1 // pred_region
      %s14 = ssub.s32 128, 128
      %15 = vsyncadd [#allocation7], %s14
      %s17 = sshll.u32 [#allocation6], 4
      %s18 = int_to_ptr.vmem [resolvable:$true] %s17
      %20 = dma.hbm_to_vmem [thread:$0]  %s0, 128, %s18, [#allocation7]
    $region5: #{tpu_custom_call.1} parent=1 // pred_fallthru
      _
    // Predicated region
    $region6: #{tpu_custom_call.1} parent=1 // pred_check
      _
    $region7: #{tpu_custom_call.1} parent=1 // pred_check_branch
      %22 = sbr.rel (0) target = $region9
    $region8: #{tpu_custom_call.1} parent=1 // pred_region
      %s24 = ssub.s32 2048, 2048
      %25 = vsyncadd [#allocation10], %s24
      %s26 = sshll.u32 [#allocation9], 4
      %s27 = int_to_ptr.vmem [resolvable:$true] %s26
      %32 = dma.hbm_to_vmem [thread:$0]  %s1, 2048, %s27, [#allocation10], 128, 128, 8
    $region9: #{tpu_custom_call.1} parent=1 // pred_fallthru
      _
    // Predicated region
    $region10: #{tpu_custom_call.1} parent=1 // pred_check
      _
    $region11: #{tpu_custom_call.1} parent=1 // pred_check_branch
      %34 = sbr.rel (0) target = $region13
    $region12: #{tpu_custom_call.1} parent=1 // pred_region
      %s36 = ssub.s32 128, 128
      %37 = vsyncadd [#allocation10], %s36
      %s39 = sshll.u32 [#allocation11], 4
      %s40 = int_to_ptr.vmem [resolvable:$true] %s39
      %42 = dma.hbm_to_vmem [thread:$0]  %s2, 128, %s40, [#allocation10]
    $region13: #{tpu_custom_call.1} parent=1 // pred_fallthru
      _
    // Predicated region
    $region14: #{tpu_custom_call.1} parent=1 // pred_check
      _
    $region15: #{tpu_custom_call.1} parent=1 // pred_check_branch
      %44 = sbr.rel (0) target = $region17
    $region16: #{tpu_custom_call.1} parent=1 // pred_region
      %45 = dma.done [#allocation7], 128
    $region17: #{tpu_custom_call.1} parent=1 // pred_fallthru
      _
    // Predicated region
    $region18: #{tpu_custom_call.1} parent=1 // pred_check
      _
    $region19: #{tpu_custom_call.1} parent=1 // pred_check_branch
      %47 = sbr.rel (0) target = $region21
    $region20: #{tpu_custom_call.1} parent=1 // pred_region
      %48 = dma.done [#allocation10], 2048
    $region21: #{tpu_custom_call.1} parent=1 // pred_fallthru
      _
    // Predicated region
    $region22: #{tpu_custom_call.1} parent=1 // pred_check
      _
    $region23: #{tpu_custom_call.1} parent=1 // pred_check_branch
      %50 = sbr.rel (0) target = $region25
    $region24: #{tpu_custom_call.1} parent=1 // pred_region
      %51 = dma.done [#allocation10], 128
    $region25: #{tpu_custom_call.1} parent=1 // pred_fallthru
      _
    %p52 = scmp.eq.s32.totalorder 0, 0
    // Predicated region
    $region26: #{tpu_custom_call.1} parent=1 // pred_check
      %p53 = pneg %p52
    $region27: #{tpu_custom_call.1} parent=1 // pred_check_branch
      %55 = sbr.rel (%p53) target = $region29
    $region28: #{tpu_custom_call.1} parent=1 // pred_region
      %v56 = vld [vmem:[#allocation11] sm:$0xff]
      %v57 = vld [vmem:[#allocation9] sm:$0xff]
      %v58 = vld [vmem:[#allocation9 + $0x8] sm:$0xff]
      %v59 = vld [vmem:[#allocation9 + $0x10] sm:$0xff]
      %v60 = vld [vmem:[#allocation9 + $0x18] sm:$0xff]
      %v61 = vld [vmem:[#allocation9 + $0x20] sm:$0xff]
      %v62 = vld [vmem:[#allocation9 + $0x28] sm:$0xff]
      %v63 = vld [vmem:[#allocation9 + $0x30] sm:$0xff]
      %v64 = vld [vmem:[#allocation9 + $0x38] sm:$0xff]
      %v65 = vld [vmem:[#allocation9 + $0x40] sm:$0xff]
      %v66 = vld [vmem:[#allocation9 + $0x48] sm:$0xff]
      %v67 = vld [vmem:[#allocation9 + $0x50] sm:$0xff]
      %v68 = vld [vmem:[#allocation9 + $0x58] sm:$0xff]
      %v69 = vld [vmem:[#allocation9 + $0x60] sm:$0xff]
      %v70 = vld [vmem:[#allocation9 + $0x68] sm:$0xff]
      %v71 = vld [vmem:[#allocation9 + $0x70] sm:$0xff]
      %v72 = vld [vmem:[#allocation9 + $0x78] sm:$0xff]
      %73 = vmatprep.subr.mxu0 0.0
      %74 = vmatpush1.xpose.msra.mxu0 %v72
      %75 = vmatprep.subr.mxu0 0.0
      %76 = vmatpush1.xpose.msra.mxu0 %v71
      %77 = vmatprep.subr.mxu0 0.0
      %78 = vmatpush1.xpose.msra.mxu0 %v70
      %79 = vmatprep.subr.mxu0 0.0
      %80 = vmatpush1.xpose.msra.mxu0 %v69
      %81 = vmatprep.subr.mxu0 0.0
      %82 = vmatpush1.xpose.msra.mxu0 %v68
      %83 = vmatprep.subr.mxu0 0.0
      %84 = vmatpush1.xpose.msra.mxu0 %v67
      %85 = vmatprep.subr.mxu0 0.0
      %86 = vmatpush1.xpose.msra.mxu0 %v66
      %87 = vmatprep.subr.mxu0 0.0
      %88 = vmatpush1.xpose.msra.mxu0 %v65
      %89 = vmatprep.subr.mxu0 0.0
      %90 = vmatpush1.xpose.msra.mxu0 %v64
      %91 = vmatprep.subr.mxu0 0.0
      %92 = vmatpush1.xpose.msra.mxu0 %v63
      %93 = vmatprep.subr.mxu0 0.0
      %94 = vmatpush1.xpose.msra.mxu0 %v62
      %95 = vmatprep.subr.mxu0 0.0
      %96 = vmatpush1.xpose.msra.mxu0 %v61
      %97 = vmatprep.subr.mxu0 0.0
      %98 = vmatpush1.xpose.msra.mxu0 %v60
      %99 = vmatprep.subr.mxu0 0.0
      %100 = vmatpush1.xpose.msra.mxu0 %v59
      %101 = vmatprep.subr.mxu0 0.0
      %102 = vmatpush1.xpose.msra.mxu0 %v58
      %103 = vmatprep.subr.mxu0 0.0
      %104 = vmatpush1.xpose.msra.mxu0 %v57
      %105 = vmatprep.subr.mxu0 0.0
      %106 = vmatpush2.xpose.msra.mxu0 0.0
      %107 = vmatprep.subr.mxu0 0.0
      %108 = vmatpush2.xpose.msra.mxu0 0.0
      %109 = vmatprep.subr.mxu0 0.0
      %110 = vmatpush2.xpose.msra.mxu0 0.0
      %111 = vmatprep.subr.mxu0 0.0
      %112 = vmatpush2.xpose.msra.mxu0 0.0
      %113 = vmatprep.subr.mxu0 0.0
      %114 = vmatpush2.xpose.msra.mxu0 0.0
      %115 = vmatprep.subr.mxu0 0.0
      %116 = vmatpush2.xpose.msra.mxu0 0.0
      %117 = vmatprep.subr.mxu0 0.0
      %118 = vmatpush2.xpose.msra.mxu0 0.0
      %119 = vmatprep.subr.mxu0 0.0
      %120 = vmatpush2.xpose.msra.mxu0 0.0
      %121 = vmatprep.subr.mxu0 0.0
      %122 = vmatpush2.xpose.msra.mxu0 0.0
      %123 = vmatprep.subr.mxu0 0.0
      %124 = vmatpush2.xpose.msra.mxu0 0.0
      %125 = vmatprep.subr.mxu0 0.0
      %126 = vmatpush2.xpose.msra.mxu0 0.0
      %127 = vmatprep.subr.mxu0 0.0
      %128 = vmatpush2.xpose.msra.mxu0 0.0
      %129 = vmatprep.subr.mxu0 0.0
      %130 = vmatpush2.xpose.msra.mxu0 0.0
      %131 = vmatprep.subr.mxu0 0.0
      %132 = vmatpush2.xpose.msra.mxu0 0.0
      %133 = vmatprep.subr.mxu0 0.0
      %134 = vmatpush2.xpose.msra.mxu0 0.0
      %135 = vmatprep.subr.mxu0 0.0
      %136 = vmatpush2.xpose.msra.mxu0 0.0
      %137 = vmatprep.mubr.f32.mxu0 0.0
      %138 = vmatmul.mubr.f32.gmra.mxu0 %v56
      %v139 = vpop.f32.mrf.mxu0
      %v140 = vadd.f32 0.0, %v139
      %v141 = vpop.f32.mrf.mxu0
      %142 = vdwg.mxu0
      %143 = vst [vmem:[#allocation2] sm:$0xff] %v140
      %vm144 = vcmask 7168
      %145 = vst.msk [vmem:[#allocation4] sm:$0xff] %vm144, -inf
      %146 = vst.msk [vmem:[#allocation5] sm:$0xff] %vm144, 0.0
      %147 = vst [vmem:[#allocation3] sm:$0xff] 0.0
    $region29: #{tpu_custom_call.1} parent=1 // pred_fallthru
      _
    %v148 = vld [vmem:[#allocation6] sm:$0xff]
    %v149 = vld [vmem:[#allocation2] sm:$0xff]
    %150 = vmatprep.subr.mxu0 0.0
    %151 = vmatpush1.xpose.msra.mxu0 0.0
    %152 = vmatprep.subr.mxu0 0.0
    %153 = vmatpush1.xpose.msra.mxu0 0.0
    %154 = vmatprep.subr.mxu0 0.0
    %155 = vmatpush1.xpose.msra.mxu0 0.0
    %156 = vmatprep.subr.mxu0 0.0
    %157 = vmatpush1.xpose.msra.mxu0 0.0
    %158 = vmatprep.subr.mxu0 0.0
    %159 = vmatpush1.xpose.msra.mxu0 0.0
    %160 = vmatprep.subr.mxu0 0.0
    %161 = vmatpush1.xpose.msra.mxu0 0.0
    %162 = vmatprep.subr.mxu0 0.0
    %163 = vmatpush1.xpose.msra.mxu0 0.0
    %164 = vmatprep.subr.mxu0 0.0
    %165 = vmatpush1.xpose.msra.mxu0 0.0
    %166 = vmatprep.subr.mxu0 0.0
    %167 = vmatpush1.xpose.msra.mxu0 0.0
    %168 = vmatprep.subr.mxu0 0.0
    %169 = vmatpush1.xpose.msra.mxu0 0.0
    %170 = vmatprep.subr.mxu0 0.0
    %171 = vmatpush1.xpose.msra.mxu0 0.0
    %172 = vmatprep.subr.mxu0 0.0
    %173 = vmatpush1.xpose.msra.mxu0 0.0
    %174 = vmatprep.subr.mxu0 0.0
    %175 = vmatpush1.xpose.msra.mxu0 0.0
    %176 = vmatprep.subr.mxu0 0.0
    %177 = vmatpush1.xpose.msra.mxu0 0.0
    %178 = vmatprep.subr.mxu0 0.0
    %179 = vmatpush1.xpose.msra.mxu0 0.0
    %180 = vmatprep.subr.mxu0 0.0
    %181 = vmatpush1.xpose.msra.mxu0 %v148
    %182 = vmatprep.subr.mxu0 0.0
    %183 = vmatpush2.xpose.msra.mxu0 0.0
    %184 = vmatprep.subr.mxu0 0.0
    %185 = vmatpush2.xpose.msra.mxu0 0.0
    %186 = vmatprep.subr.mxu0 0.0
    %187 = vmatpush2.xpose.msra.mxu0 0.0
    %188 = vmatprep.subr.mxu0 0.0
    %189 = vmatpush2.xpose.msra.mxu0 0.0
    %190 = vmatprep.subr.mxu0 0.0
    %191 = vmatpush2.xpose.msra.mxu0 0.0
    %192 = vmatprep.subr.mxu0 0.0
    %193 = vmatpush2.xpose.msra.mxu0 0.0
    %194 = vmatprep.subr.mxu0 0.0
    %195 = vmatpush2.xpose.msra.mxu0 0.0
    %196 = vmatprep.subr.mxu0 0.0
    %197 = vmatpush2.xpose.msra.mxu0 0.0
    %198 = vmatprep.subr.mxu0 0.0
    %199 = vmatpush2.xpose.msra.mxu0 0.0
    %200 = vmatprep.subr.mxu0 0.0
    %201 = vmatpush2.xpose.msra.mxu0 0.0
    %202 = vmatprep.subr.mxu0 0.0
    %203 = vmatpush2.xpose.msra.mxu0 0.0
    %204 = vmatprep.subr.mxu0 0.0
    %205 = vmatpush2.xpose.msra.mxu0 0.0
    %206 = vmatprep.subr.mxu0 0.0
    %207 = vmatpush2.xpose.msra.mxu0 0.0
    %208 = vmatprep.subr.mxu0 0.0
    %209 = vmatpush2.xpose.msra.mxu0 0.0
    %210 = vmatprep.subr.mxu0 0.0
    %211 = vmatpush2.xpose.msra.mxu0 0.0
    %212 = vmatprep.subr.mxu0 0.0
    %213 = vmatpush2.xpose.msra.mxu0 0.0
    %214 = vmatprep.mubr.f32.mxu0 0.0
    %215 = vmatmul.mubr.f32.gmra.mxu0 %v149
    %v216 = vpop.f32.mrf.mxu0
    %v217 = vadd.f32 0.0, %v216
    %v218 = vpop.f32.mrf.mxu0
    %219 = vdwg.mxu0
    %v220 = vld [vmem:[#allocation4] sm:$0xff]
    %vm221 = vcmask 64512
    %v222 = vsel %vm221, %v217, -inf
    %223 = vmax.xlane.f32.xlu0 %v222
    %v224 = vpop.xlane.xlu0 %223
    %v225 = vmax.f32 %v220, %v224
    %v226 = vsub.f32 %v220, %v225
    %v227 = vmul.f32 %v226, 1.442695
    %v228 = vpow.pop %v227
    %230 = vset.pattern.permute.xlu0 0
    %231 = vperm.xlu0 %230, %v225
    %v232 = vpop.permute.xlu0 %231
    %v234 = vsub.f32 %v217, %v232
    %v235 = vmul.f32 %v234, 1.442695
    %v236 = vpow.pop %v235
    %v237 = vld [vmem:[#allocation5] sm:$0xff]
    %v238 = vmul.f32 %v228, %v237
    %v239 = vsel %vm221, %v236, 0.0
    %240 = vadd.xlane.f32.xlu0 %v239
    %v241 = vpop.xlane.xlu0 %240
    %v242 = vadd.f32 %v238, %v241
    %vm243 = vcmask 7168
    %244 = vst.msk [vmem:[#allocation5] sm:$0xff] %vm243, %v242
    %245 = vst.msk [vmem:[#allocation4] sm:$0xff] %vm243, %v225
    %v247 = vsel %vm221, %v236, 0
    %249 = vmatprep.subr.mxu0 0.0
    %250 = vmatpush1.msra.mxu0 0.0
    %251 = vmatprep.subr.mxu0 0.0
    %252 = vmatpush1.msra.mxu0 0.0
    %253 = vmatprep.subr.mxu0 0.0
    %254 = vmatpush1.msra.mxu0 0.0
    %255 = vmatprep.subr.mxu0 0.0
    %256 = vmatpush1.msra.mxu0 0.0
    %257 = vmatprep.subr.mxu0 0.0
    %258 = vmatpush1.msra.mxu0 0.0
    %259 = vmatprep.subr.mxu0 0.0
    %260 = vmatpush1.msra.mxu0 0.0
    %261 = vmatprep.subr.mxu0 0.0
    %262 = vmatpush1.msra.mxu0 0.0
    %263 = vmatprep.subr.mxu0 0.0
    %264 = vmatpush1.msra.mxu0 0.0
    %265 = vmatprep.subr.mxu0 0.0
    %266 = vmatpush1.msra.mxu0 0.0
    %267 = vmatprep.subr.mxu0 0.0
    %268 = vmatpush1.msra.mxu0 0.0
    %269 = vmatprep.subr.mxu0 0.0
    %270 = vmatpush1.msra.mxu0 0.0
    %271 = vmatprep.subr.mxu0 0.0
    %272 = vmatpush1.msra.mxu0 0.0
    %273 = vmatprep.subr.mxu0 0.0
    %274 = vmatpush1.msra.mxu0 0.0
    %275 = vmatprep.subr.mxu0 0.0
    %276 = vmatpush1.msra.mxu0 0.0
    %277 = vmatprep.subr.mxu0 0.0
    %278 = vmatpush1.msra.mxu0 0.0
    %279 = vmatprep.subr.mxu0 0.0
    %280 = vmatpush1.msra.mxu0 %v148
    %281 = vmatprep.subr.mxu0 0.0
    %282 = vmatpush2.msra.mxu0 0.0
    %283 = vmatprep.subr.mxu0 0.0
    %284 = vmatpush2.msra.mxu0 0.0
    %285 = vmatprep.subr.mxu0 0.0
    %286 = vmatpush2.msra.mxu0 0.0
    %287 = vmatprep.subr.mxu0 0.0
    %288 = vmatpush2.msra.mxu0 0.0
    %289 = vmatprep.subr.mxu0 0.0
    %290 = vmatpush2.msra.mxu0 0.0
    %291 = vmatprep.subr.mxu0 0.0
    %292 = vmatpush2.msra.mxu0 0.0
    %293 = vmatprep.subr.mxu0 0.0
    %294 = vmatpush2.msra.mxu0 0.0
    %295 = vmatprep.subr.mxu0 0.0
    %296 = vmatpush2.msra.mxu0 0.0
    %297 = vmatprep.subr.mxu0 0.0
    %298 = vmatpush2.msra.mxu0 0.0
    %299 = vmatprep.subr.mxu0 0.0
    %300 = vmatpush2.msra.mxu0 0.0
    %301 = vmatprep.subr.mxu0 0.0
    %302 = vmatpush2.msra.mxu0 0.0
    %303 = vmatprep.subr.mxu0 0.0
    %304 = vmatpush2.msra.mxu0 0.0
    %305 = vmatprep.subr.mxu0 0.0
    %306 = vmatpush2.msra.mxu0 0.0
    %307 = vmatprep.subr.mxu0 0.0
    %308 = vmatpush2.msra.mxu0 0.0
    %309 = vmatprep.subr.mxu0 0.0
    %310 = vmatpush2.msra.mxu0 0.0
    %311 = vmatprep.subr.mxu0 0.0
    %312 = vmatpush2.msra.mxu0 0.0
    %313 = vmatprep.mubr.f32.mxu0 0.0
    %314 = vmatmul.mubr.f32.gmra.mxu0 %v247
    %v315 = vpop.f32.mrf.mxu0
    %v316 = vadd.f32 0.0, %v315
    %v317 = vpop.f32.mrf.mxu0
    %318 = vdwg.mxu0
    %v319 = vld [vmem:[#allocation3] sm:$0xff]
    %321 = vset.pattern.permute.xlu0 0
    %322 = vperm.xlu0 %321, %v228
    %v323 = vpop.permute.xlu0 %322
    %v325 = vmul.f32 %v323, %v319
    %v326 = vadd.f32 %v325, %v316
    %327 = vst [vmem:[#allocation3] sm:$0xff] %v326
    // Predicated region
    $region30: #{tpu_custom_call.1} parent=1 // pred_check
      %p328 = pneg %p52
    $region31: #{tpu_custom_call.1} parent=1 // pred_check_branch
      %330 = sbr.rel (%p328) target = $region33
    $region32: #{tpu_custom_call.1} parent=1 // pred_region
      %v331 = vld [vmem:[#allocation5] sm:$0xff]
      %v332 = vrcp.pop %v331
      %v333 = vld [vmem:[#allocation3] sm:$0xff]
      %335 = vset.pattern.permute.xlu0 0
      %336 = vperm.xlu0 %335, %v332
      %v337 = vpop.permute.xlu0 %336
      %v339 = vmul.f32 %v333, %v337
      %340 = vst [vmem:[#allocation12] sm:$0xff] %v339
    $region33: #{tpu_custom_call.1} parent=1 // pred_fallthru
      _
    // Predicated region
    $region34: #{tpu_custom_call.1} parent=1 // pred_check
      _
    $region35: #{tpu_custom_call.1} parent=1 // pred_check_branch
      %342 = sbr.rel (0) target = $region37
    $region36: #{tpu_custom_call.1} parent=1 // pred_region
      %s344 = ssub.s32 128, 128
      %345 = vsyncadd [#allocation8], %s344
      %s347 = sshll.u32 [#allocation12], 4
      %s348 = int_to_ptr.vmem [resolvable:$true] %s347
      %350 = dma.vmem_to_hbm [thread:$0]  %s348, 128, %s3, [#allocation8]
    $region37: #{tpu_custom_call.1} parent=1 // pred_fallthru
      _
    // Predicated region
    $region38: #{tpu_custom_call.1} parent=1 // pred_check
      _
    $region39: #{tpu_custom_call.1} parent=1 // pred_check_branch
      %352 = sbr.rel (0) target = $region41
    $region40: #{tpu_custom_call.1} parent=1 // pred_region
      %353 = dma.done [#allocation8], 128
    $region41: #{tpu_custom_call.1} parent=1 // pred_fallthru
      _
    %354 = vsyncpa [#allocation7], 1
    %355 = vsyncpa [#allocation10], 1
    %356 = vsyncpa [#allocation8], 1

</llo_original>
